<compile_context>
chip_gen: v7x
topology: tpu7x:2x2x1
jax: 0.10.0
libtpu: 0.0.40
codegen_flags: <defaults>
</compile_context>

<pallas_src>
import numpy as np
import jax
import jax.numpy as jnp
from jax.experimental import pallas as pl
from jax.experimental.pallas import tpu as pltpu

H = 12
W = 12
HW = H * W           # 144
LANES = 256          # padded lane width inside the kernel (native 128-multiple)
COUT = 256
K = 11               # 9 (3x3 taps) + 1 (1x1 conv) + 1 (bias via ones row)


def _fix_masks_np():
    """(4, LANES) f32 edge masks over the flat HW lane axis (p = i*W + j).

    Rows: j==0, j==W-1, i==0, i==H-1 (1.0 where true, 0.0 elsewhere / padding).
    Replicate padding == "keep the unshifted value at the boundary row/column",
    so these are the only positions a lane rotation can get wrong.
    """
    p = np.arange(LANES)
    i, j = p // W, p % W
    valid = p < HW
    return np.stack([
        (j == 0) & valid,
        (j == W - 1) & valid,
        (i == 0) & valid,
        (i == H - 1) & valid,
    ]).astype(np.float32)


def _fused_conv_relu_kernel(xp_ref, wt_ref, fix_ref, o_ref, at_ref):
    """out[c, p] = relu( sum_k wt[k, c] * at[k, p] ).

    A^T (K, HW) is built in-kernel from the flat input row:
      rows 0..8 : 3x3 taps with replicate padding (pltpu.roll + edge blends),
      row 9     : the 1x1-conv tap (identity; its dilation is a no-op),
      row 10    : ones (folds the summed bias into the GEMM).
    Weight is lane-dense (K, C); contraction is over dim 0 of both operands.
    """
    x = xp_ref[...]                       # (1, LANES); lanes [HW:) are zero
    m_j0 = fix_ref[0:1, :]
    m_j1 = fix_ref[1:2, :]
    m_i0 = fix_ref[2:3, :]
    m_i1 = fix_ref[3:4, :]

    def shift(v, d):
        # shifted[p] = v[(p + d) mod LANES]   (XLU lane rotation, native width)
        return pltpu.roll(v, shift=(-d) % LANES, axis=1)

    def blend(m, keep, moved):
        # where(m, keep, moved) as pure VPU arithmetic
        return moved + m * (keep - moved)

    # Horizontal (dw) passes: wrong values can only land on j==0 / j==W-1,
    # where replicate padding wants the unshifted value anyway.
    h = (blend(m_j0, x, shift(x, -1)), x, blend(m_j1, x, shift(x, +1)))

    # Vertical (dh) pass per tap; same argument for the i==0 / i==H-1 rows.
    for kh in range(3):
        for kw in range(3):
            hx = h[kw]
            if kh == 0:
                tap = blend(m_i0, hx, shift(hx, -W))
            elif kh == 1:
                tap = hx
            else:
                tap = blend(m_i1, hx, shift(hx, +W))
            at_ref[kh * 3 + kw, :] = tap[0, :HW]
    at_ref[9, :] = x[0, :HW]                       # 1x1 conv tap
    at_ref[10, :] = jnp.ones((HW,), jnp.float32)   # bias row

    # Weight-stationary A^T B orientation: contract dim 0 of both operands.
    acc = jax.lax.dot_general(
        wt_ref[...], at_ref[...],
        dimension_numbers=(((0,), (0,)), ((), ())),
        preferred_element_type=jnp.float32)        # (C, HW)
    o_ref[...] = jnp.maximum(acc, 0.0)


def _fused_conv_relu(xp, wt, fix):
    """xp: (1, LANES), wt: (K, C), fix: (4, LANES) -> (C, HW) float32."""
    cout = wt.shape[1]
    return pl.pallas_call(
        _fused_conv_relu_kernel,
        out_shape=jax.ShapeDtypeStruct((cout, HW), jnp.float32),
        # Gridless: whole problem (< 0.5 MB) resident in VMEM; no grid-step /
        # pipeline scaffolding for this shape.
        in_specs=[
            pl.BlockSpec(memory_space=pltpu.MemorySpace.VMEM),
            pl.BlockSpec(memory_space=pltpu.MemorySpace.VMEM),
            pl.BlockSpec(memory_space=pltpu.MemorySpace.VMEM),
        ],
        out_specs=pl.BlockSpec(memory_space=pltpu.MemorySpace.VMEM),
        scratch_shapes=[pltpu.VMEM((K, HW), jnp.float32)],
    )(xp, wt, fix)


def pack_params(w1, b1, w2, b2):
    """Fold both convs and both biases into one lane-dense (K, C) weight.

    Row k<9 : w1[:, 0, k//3, k%3]   (3x3 taps, kh*3+kw order)
    Row 9   : w2[:, 0, 0, 0]        (1x1 conv)
    Row 10  : b1 + b2               (bias, multiplied by the ones row of A^T)
    Called once at parameter-load time (hoisted out of the per-call path).
    """
    cout = w1.shape[0]
    return jnp.concatenate([
        w1.reshape(cout, 9).T,         # (9, C)
        w2.reshape(1, cout),           # (1, C)
        (b1 + b2).reshape(1, cout),    # (1, C)
    ], axis=0)                         # (K, C)


@jax.jit
def model_forward(x, wt):
    """x: (1, 1, H, W) NCHW float32, packed weight (K, C) -> (1, C, H, W)."""
    n, cin, h, w = x.shape
    assert n == 1 and cin == 1 and h == H and w == W
    cout = wt.shape[1]
    # Flat HW onto the lane axis, zero-padded to 256 lanes so the in-kernel tap
    # construction uses native-width lane rotations.  This replaces the old
    # im2col gather HLO + its (10, HW) HBM round trip; the only remaining
    # wrapper op is this 576-byte relayout fusion.
    xp = jnp.pad(x.reshape(1, h * w), ((0, 0), (0, LANES - h * w)))
    fix = jnp.asarray(_fix_masks_np())        # compile-time constant masks
    out = _fused_conv_relu(xp, wt, fix)       # (C, HW)
    # (C, HW) -> (1, C, H, W): plain reshape outside the kernel.
    return out.reshape(1, cout, h, w)


def _reference_forward(x, w1, b1, w2, b2):
    """Pure-JAX reference for sanity checking."""
    x2d = x[0, 0]
    h, wd = x2d.shape
    xpad = jnp.pad(x2d, 1, mode="edge")
    v1 = jnp.zeros((COUT, h, wd), jnp.float32)
    for kh in range(3):
        for kw in range(3):
            v1 = v1 + w1[:, 0, kh, kw][:, None, None] * xpad[kh:kh + h, kw:kw + wd][None]
    v1 = v1 + b1[:, None, None]
    v2 = w2[:, 0, 0, 0][:, None, None] * x2d[None] + b2[:, None, None]
    return jnp.maximum(v1 + v2, 0.0)[None]


if __name__ == "__main__":
    key = jax.random.PRNGKey(0)
    k_x, k_w1, k_b1, k_w2, k_b2 = jax.random.split(key, 5)

    # Input: (1, 1, 12, 12) as implied by the module.
    x = jax.random.normal(k_x, (1, 1, 12, 12), dtype=jnp.float32)

    # Deterministic parameter init (PyTorch-style uniform bounds 1/sqrt(fan_in)).
    bound1 = 1.0 / (1 * 3 * 3) ** 0.5
    w1 = jax.random.uniform(k_w1, (256, 1, 3, 3), jnp.float32, -bound1, bound1)
    b1 = jax.random.uniform(k_b1, (256,), jnp.float32, -bound1, bound1)
    bound2 = 1.0 / (1 * 1 * 1) ** 0.5
    w2 = jax.random.uniform(k_w2, (256, 1, 1, 1), jnp.float32, -bound2, bound2)
    b2 = jax.random.uniform(k_b2, (256,), jnp.float32, -bound2, bound2)

    # Hoisted weight/bias packing: done once, not per forward call.
    wt = pack_params(w1, b1, w2, b2)

    out = model_forward(x, wt)
    jax.block_until_ready(out)
    assert out.shape == (1, 256, 12, 12), out.shape

    ref = _reference_forward(x, w1, b1, w2, b2)
    assert jnp.allclose(out, ref, atol=1e-4, rtol=1e-4), "mismatch vs reference"

    print("KERNEL_OK")
</pallas_src>

<mosaic_0001>
module attributes {stable_mosaic.version = 11 : i64} {
  func.func @_fused_conv_relu_kernel(%arg0: memref<1x256xf32, #tpu.memory_space<vmem>>, %arg1: memref<11x256xf32, #tpu.memory_space<vmem>>, %arg2: memref<4x256xf32, #tpu.memory_space<vmem>>, %arg3: memref<256x144xf32, #tpu.memory_space<vmem>>, %arg4: memref<11x144xf32, #tpu.memory_space<vmem>>) attributes {dimension_semantics = [], scalar_prefetch = 0 : i64, scratch_operands = 1 : i64, tpu.core_type = #tpu.core_type<tc>} {
    %c0 = arith.constant 0 : index
    %c0_0 = arith.constant 0 : index
    %0 = vector.load %arg0[%c0, %c0_0] : memref<1x256xf32, #tpu.memory_space<vmem>>, vector<1x256xf32>
    %c0_1 = arith.constant 0 : index
    %c0_2 = arith.constant 0 : index
    %1 = vector.load %arg2[%c0_1, %c0_2] : memref<4x256xf32, #tpu.memory_space<vmem>>, vector<1x256xf32>
    %c1 = arith.constant 1 : index
    %c0_3 = arith.constant 0 : index
    %2 = vector.load %arg2[%c1, %c0_3] : memref<4x256xf32, #tpu.memory_space<vmem>>, vector<1x256xf32>
    %c2 = arith.constant 2 : index
    %c0_4 = arith.constant 0 : index
    %3 = vector.load %arg2[%c2, %c0_4] : memref<4x256xf32, #tpu.memory_space<vmem>>, vector<1x256xf32>
    %c3 = arith.constant 3 : index
    %c0_5 = arith.constant 0 : index
    %4 = vector.load %arg2[%c3, %c0_5] : memref<4x256xf32, #tpu.memory_space<vmem>>, vector<1x256xf32>
    %c1_i32 = arith.constant 1 : i32
    %5 = tpu.dynamic_rotate %0 by %c1_i32 dim 1 : vector<1x256xf32>, i32 -> vector<1x256xf32>
    %6 = arith.subf %0, %5 : vector<1x256xf32>
    %7 = arith.mulf %1, %6 : vector<1x256xf32>
    %8 = arith.addf %5, %7 : vector<1x256xf32>
    %c255_i32 = arith.constant 255 : i32
    %9 = tpu.dynamic_rotate %0 by %c255_i32 dim 1 : vector<1x256xf32>, i32 -> vector<1x256xf32>
    %10 = arith.subf %0, %9 : vector<1x256xf32>
    %11 = arith.mulf %2, %10 : vector<1x256xf32>
    %12 = arith.addf %9, %11 : vector<1x256xf32>
    %c12_i32 = arith.constant 12 : i32
    %13 = tpu.dynamic_rotate %8 by %c12_i32 dim 1 : vector<1x256xf32>, i32 -> vector<1x256xf32>
    %14 = arith.subf %8, %13 : vector<1x256xf32>
    %15 = arith.mulf %3, %14 : vector<1x256xf32>
    %16 = arith.addf %13, %15 : vector<1x256xf32>
    %17 = vector.extract_strided_slice %16 {offsets = [0, 0], sizes = [1, 144], strides = [1, 1]} : vector<1x256xf32> to vector<1x144xf32>
    %18 = vector.shape_cast %17 : vector<1x144xf32> to vector<144xf32>
    %c0_6 = arith.constant 0 : index
    %c0_7 = arith.constant 0 : index
    %19 = vector.load %arg4[%c0_6, %c0_7] : memref<11x144xf32, #tpu.memory_space<vmem>>, vector<1x144xf32>
    %20 = vector.shape_cast %19 : vector<1x144xf32> to vector<144xf32>
    %21 = vector.shape_cast %18 : vector<144xf32> to vector<1x144xf32>
    tpu.vector_store %arg4[%c0_6, %c0_7], %21 {strides = array<i32>} : memref<11x144xf32, #tpu.memory_space<vmem>>, vector<1x144xf32>,
    %c12_i32_8 = arith.constant 12 : i32
    %22 = tpu.dynamic_rotate %0 by %c12_i32_8 dim 1 : vector<1x256xf32>, i32 -> vector<1x256xf32>
    %23 = arith.subf %0, %22 : vector<1x256xf32>
    %24 = arith.mulf %3, %23 : vector<1x256xf32>
    %25 = arith.addf %22, %24 : vector<1x256xf32>
    %26 = vector.extract_strided_slice %25 {offsets = [0, 0], sizes = [1, 144], strides = [1, 1]} : vector<1x256xf32> to vector<1x144xf32>
    %27 = vector.shape_cast %26 : vector<1x144xf32> to vector<144xf32>
    %c1_9 = arith.constant 1 : index
    %c0_10 = arith.constant 0 : index
    %28 = vector.load %arg4[%c1_9, %c0_10] : memref<11x144xf32, #tpu.memory_space<vmem>>, vector<1x144xf32>
    %29 = vector.shape_cast %28 : vector<1x144xf32> to vector<144xf32>
    %30 = vector.shape_cast %27 : vector<144xf32> to vector<1x144xf32>
    tpu.vector_store %arg4[%c1_9, %c0_10], %30 {strides = array<i32>} : memref<11x144xf32, #tpu.memory_space<vmem>>, vector<1x144xf32>,
    %c12_i32_11 = arith.constant 12 : i32
    %31 = tpu.dynamic_rotate %12 by %c12_i32_11 dim 1 : vector<1x256xf32>, i32 -> vector<1x256xf32>
    %32 = arith.subf %12, %31 : vector<1x256xf32>
    %33 = arith.mulf %3, %32 : vector<1x256xf32>
    %34 = arith.addf %31, %33 : vector<1x256xf32>
    %35 = vector.extract_strided_slice %34 {offsets = [0, 0], sizes = [1, 144], strides = [1, 1]} : vector<1x256xf32> to vector<1x144xf32>
    %36 = vector.shape_cast %35 : vector<1x144xf32> to vector<144xf32>
    %c2_12 = arith.constant 2 : index
    %c0_13 = arith.constant 0 : index
    %37 = vector.load %arg4[%c2_12, %c0_13] : memref<11x144xf32, #tpu.memory_space<vmem>>, vector<1x144xf32>
    %38 = vector.shape_cast %37 : vector<1x144xf32> to vector<144xf32>
    %39 = vector.shape_cast %36 : vector<144xf32> to vector<1x144xf32>
    tpu.vector_store %arg4[%c2_12, %c0_13], %39 {strides = array<i32>} : memref<11x144xf32, #tpu.memory_space<vmem>>, vector<1x144xf32>,
    %40 = vector.extract_strided_slice %8 {offsets = [0, 0], sizes = [1, 144], strides = [1, 1]} : vector<1x256xf32> to vector<1x144xf32>
    %41 = vector.shape_cast %40 : vector<1x144xf32> to vector<144xf32>
    %c3_14 = arith.constant 3 : index
    %c0_15 = arith.constant 0 : index
    %42 = vector.load %arg4[%c3_14, %c0_15] : memref<11x144xf32, #tpu.memory_space<vmem>>, vector<1x144xf32>
    %43 = vector.shape_cast %42 : vector<1x144xf32> to vector<144xf32>
    %44 = vector.shape_cast %41 : vector<144xf32> to vector<1x144xf32>
    tpu.vector_store %arg4[%c3_14, %c0_15], %44 {strides = array<i32>} : memref<11x144xf32, #tpu.memory_space<vmem>>, vector<1x144xf32>,
    %45 = vector.extract_strided_slice %0 {offsets = [0, 0], sizes = [1, 144], strides = [1, 1]} : vector<1x256xf32> to vector<1x144xf32>
    %46 = vector.shape_cast %45 : vector<1x144xf32> to vector<144xf32>
    %c4 = arith.constant 4 : index
    %c0_16 = arith.constant 0 : index
    %47 = vector.load %arg4[%c4, %c0_16] : memref<11x144xf32, #tpu.memory_space<vmem>>, vector<1x144xf32>
    %48 = vector.shape_cast %47 : vector<1x144xf32> to vector<144xf32>
    %49 = vector.shape_cast %46 : vector<144xf32> to vector<1x144xf32>
    tpu.vector_store %arg4[%c4, %c0_16], %49 {strides = array<i32>} : memref<11x144xf32, #tpu.memory_space<vmem>>, vector<1x144xf32>,
    %50 = vector.extract_strided_slice %12 {offsets = [0, 0], sizes = [1, 144], strides = [1, 1]} : vector<1x256xf32> to vector<1x144xf32>
    %51 = vector.shape_cast %50 : vector<1x144xf32> to vector<144xf32>
    %c5 = arith.constant 5 : index
    %c0_17 = arith.constant 0 : index
    %52 = vector.load %arg4[%c5, %c0_17] : memref<11x144xf32, #tpu.memory_space<vmem>>, vector<1x144xf32>
    %53 = vector.shape_cast %52 : vector<1x144xf32> to vector<144xf32>
    %54 = vector.shape_cast %51 : vector<144xf32> to vector<1x144xf32>
    tpu.vector_store %arg4[%c5, %c0_17], %54 {strides = array<i32>} : memref<11x144xf32, #tpu.memory_space<vmem>>, vector<1x144xf32>,
    %c244_i32 = arith.constant 244 : i32
    %55 = tpu.dynamic_rotate %8 by %c244_i32 dim 1 : vector<1x256xf32>, i32 -> vector<1x256xf32>
    %56 = arith.subf %8, %55 : vector<1x256xf32>
    %57 = arith.mulf %4, %56 : vector<1x256xf32>
    %58 = arith.addf %55, %57 : vector<1x256xf32>
    %59 = vector.extract_strided_slice %58 {offsets = [0, 0], sizes = [1, 144], strides = [1, 1]} : vector<1x256xf32> to vector<1x144xf32>
    %60 = vector.shape_cast %59 : vector<1x144xf32> to vector<144xf32>
    %c6 = arith.constant 6 : index
    %c0_18 = arith.constant 0 : index
    %61 = vector.load %arg4[%c6, %c0_18] : memref<11x144xf32, #tpu.memory_space<vmem>>, vector<1x144xf32>
    %62 = vector.shape_cast %61 : vector<1x144xf32> to vector<144xf32>
    %63 = vector.shape_cast %60 : vector<144xf32> to vector<1x144xf32>
    tpu.vector_store %arg4[%c6, %c0_18], %63 {strides = array<i32>} : memref<11x144xf32, #tpu.memory_space<vmem>>, vector<1x144xf32>,
    %c244_i32_19 = arith.constant 244 : i32
    %64 = tpu.dynamic_rotate %0 by %c244_i32_19 dim 1 : vector<1x256xf32>, i32 -> vector<1x256xf32>
    %65 = arith.subf %0, %64 : vector<1x256xf32>
    %66 = arith.mulf %4, %65 : vector<1x256xf32>
    %67 = arith.addf %64, %66 : vector<1x256xf32>
    %68 = vector.extract_strided_slice %67 {offsets = [0, 0], sizes = [1, 144], strides = [1, 1]} : vector<1x256xf32> to vector<1x144xf32>
    %69 = vector.shape_cast %68 : vector<1x144xf32> to vector<144xf32>
    %c7 = arith.constant 7 : index
    %c0_20 = arith.constant 0 : index
    %70 = vector.load %arg4[%c7, %c0_20] : memref<11x144xf32, #tpu.memory_space<vmem>>, vector<1x144xf32>
    %71 = vector.shape_cast %70 : vector<1x144xf32> to vector<144xf32>
    %72 = vector.shape_cast %69 : vector<144xf32> to vector<1x144xf32>
    tpu.vector_store %arg4[%c7, %c0_20], %72 {strides = array<i32>} : memref<11x144xf32, #tpu.memory_space<vmem>>, vector<1x144xf32>,
    %c244_i32_21 = arith.constant 244 : i32
    %73 = tpu.dynamic_rotate %12 by %c244_i32_21 dim 1 : vector<1x256xf32>, i32 -> vector<1x256xf32>
    %74 = arith.subf %12, %73 : vector<1x256xf32>
    %75 = arith.mulf %4, %74 : vector<1x256xf32>
    %76 = arith.addf %73, %75 : vector<1x256xf32>
    %77 = vector.extract_strided_slice %76 {offsets = [0, 0], sizes = [1, 144], strides = [1, 1]} : vector<1x256xf32> to vector<1x144xf32>
    %78 = vector.shape_cast %77 : vector<1x144xf32> to vector<144xf32>
    %c8 = arith.constant 8 : index
    %c0_22 = arith.constant 0 : index
    %79 = vector.load %arg4[%c8, %c0_22] : memref<11x144xf32, #tpu.memory_space<vmem>>, vector<1x144xf32>
    %80 = vector.shape_cast %79 : vector<1x144xf32> to vector<144xf32>
    %81 = vector.shape_cast %78 : vector<144xf32> to vector<1x144xf32>
    tpu.vector_store %arg4[%c8, %c0_22], %81 {strides = array<i32>} : memref<11x144xf32, #tpu.memory_space<vmem>>, vector<1x144xf32>,
    %82 = vector.extract_strided_slice %0 {offsets = [0, 0], sizes = [1, 144], strides = [1, 1]} : vector<1x256xf32> to vector<1x144xf32>
    %83 = vector.shape_cast %82 : vector<1x144xf32> to vector<144xf32>
    %c9 = arith.constant 9 : index
    %c0_23 = arith.constant 0 : index
    %84 = vector.load %arg4[%c9, %c0_23] : memref<11x144xf32, #tpu.memory_space<vmem>>, vector<1x144xf32>
    %85 = vector.shape_cast %84 : vector<1x144xf32> to vector<144xf32>
    %86 = vector.shape_cast %83 : vector<144xf32> to vector<1x144xf32>
    tpu.vector_store %arg4[%c9, %c0_23], %86 {strides = array<i32>} : memref<11x144xf32, #tpu.memory_space<vmem>>, vector<1x144xf32>,
    %cst = arith.constant 1.000000e+00 : f32
    %87 = vector.broadcast %cst : f32 to vector<144xf32>
    %c10 = arith.constant 10 : index
    %c0_24 = arith.constant 0 : index
    %88 = vector.load %arg4[%c10, %c0_24] : memref<11x144xf32, #tpu.memory_space<vmem>>, vector<1x144xf32>
    %89 = vector.shape_cast %88 : vector<1x144xf32> to vector<144xf32>
    %90 = vector.shape_cast %87 : vector<144xf32> to vector<1x144xf32>
    tpu.vector_store %arg4[%c10, %c0_24], %90 {strides = array<i32>} : memref<11x144xf32, #tpu.memory_space<vmem>>, vector<1x144xf32>,
    %c0_25 = arith.constant 0 : index
    %c0_26 = arith.constant 0 : index
    %91 = vector.load %arg1[%c0_25, %c0_26] : memref<11x256xf32, #tpu.memory_space<vmem>>, vector<11x256xf32>
    %c0_27 = arith.constant 0 : index
    %c0_28 = arith.constant 0 : index
    %92 = vector.load %arg4[%c0_27, %c0_28] : memref<11x144xf32, #tpu.memory_space<vmem>>, vector<11x144xf32>
    %cst_29 = arith.constant dense<0.000000e+00> : vector<256x144xf32>
    %93 = tpu.matmul %91, %92, %cst_29 {dimension_numbers = #tpu.dot_dimension_numbers<[0], [0], [1], [1], [0, 1, 1, 1], [], []>} : vector<11x256xf32>, vector<11x144xf32>, vector<256x144xf32> -> vector<256x144xf32>
    %cst_30 = arith.constant 0.000000e+00 : f32
    %94 = vector.broadcast %cst_30 : f32 to vector<256x144xf32>
    %95 = arith.maximumf %93, %94 : vector<256x144xf32>
    %c0_31 = arith.constant 0 : index
    %c0_32 = arith.constant 0 : index
    %96 = vector.load %arg3[%c0_31, %c0_32] : memref<256x144xf32, #tpu.memory_space<vmem>>, vector<256x144xf32>
    tpu.vector_store %arg3[%c0_31, %c0_32], %95 {strides = array<i32>} : memref<256x144xf32, #tpu.memory_space<vmem>>, vector<256x144xf32>,
    return
  }
}

</mosaic_0001>

<llo_original>
// kernel: model_forward.1
$region0: #{model_forward.1}
  #allocation0 [shape = 'u32[]', space=smem, size = 0x4, offset = 0x4, fixed_abs, tag = 'smem constant byte address 0x4 - core index']
  #allocation1 [shape = 'u32[144,128]{1,0:T(1,128)}', space=vmem, size = 0x12000, scoped, tag = 'internal scratch']
  #allocation2 [shape = 'f32[11,144]{1,0:T(8,128)}', space=vmem, size = 0x4000, scoped, tag = 'scratch operand']
  %s0 = inlined_call_operand.vmem [shape: f32[1,256], index: 0, kind: input, shape index: {}]
  %s1 = inlined_call_operand.vmem [shape: f32[11,256], index: 1, kind: input, shape index: {}]
  %s2 = inlined_call_operand.vmem [shape: f32[4,256], index: 2, kind: input, shape index: {}]
  %s3 = inlined_call_operand.vmem [shape: f32[256,144], index: 3, kind: output, shape index: {}]
  %s4 = sld [smem:[#allocation0]]
  $region22: #{model_forward.1} parent=0
    _
  %s6 = ssub.s32 1, %s4
  %s7 = scalar_select 0, %s6, %s4
  // Predicated region
  $region2: #{model_forward.1} parent=0 // pred_check
    _
  $region3: #{model_forward.1} parent=0 // pred_check_branch
    %9 = sbr.rel (0) target = $region5
  $region4: #{model_forward.1} parent=0 // pred_region
    _
  $region5: #{model_forward.1} parent=0 // pred_fallthru
    _
  // Predicated region
  $region6: #{model_forward.1} parent=0 // pred_check
    _
  $region7: #{model_forward.1} parent=0 // pred_check_branch
    %11 = sbr.rel (0) target = $region9
  $region8: #{model_forward.1} parent=0 // pred_region
    _
  $region9: #{model_forward.1} parent=0 // pred_fallthru
    _
  // Predicated region
  $region10: #{model_forward.1} parent=0 // pred_check
    _
  $region11: #{model_forward.1} parent=0 // pred_check_branch
    %13 = sbr.rel (0) target = $region13
  $region12: #{model_forward.1} parent=0 // pred_region
    _
  $region13: #{model_forward.1} parent=0 // pred_fallthru
    _
  %v14 = vld [vmem:[%s0] sm:$0x3]
  %v15 = vld [vmem:[%s2] ss:$4 sm:$0x3]
  %s16 = scalar_lea.vmem %s2, 1
  %v17 = vld [vmem:[%s16] ss:$4 sm:$0x3]
  %s18 = scalar_lea.vmem %s2, 2
  %v19 = vld [vmem:[%s18] ss:$4 sm:$0x3]
  %s20 = scalar_lea.vmem %s2, 3
  %v21 = vld [vmem:[%s20] ss:$4 sm:$0x3]
  %v23 = vlaneseq
  %v24 = vshrl.u32 %v23, 7
  %v25 = vsub.s32 0, %v24
  %v26 = vrot.slane %v14, %v25
  %v27 = vlaneseq
  %v28 = vshrl.u32 %v27, 7
  %v29 = vsub.s32 1, %v28
  %v30 = vrot.slane %v14, %v29
  %33 = vrot.lane.b32.xlu0 %v26, 1
  %v34 = vpop.permute.xlu0 %33
  %35 = vrot.lane.b32.xlu0 %v30, 1
  %v36 = vpop.permute.xlu0 %35
  %v37 = vlaneseq
  %v38 = vand.u32 %v37, 127
  %vm39 = vcmp.lt.s32.totalorder %v38, 1
  %v40 = vsel %vm39, %v34, %v36
  %v41 = vsel %vm39, %v36, %v34
  %v44 = vcombine.low %v41, %v40
  %v46 = vunpack.c.l.s4 1966171168
  %v47 = vunpack.c.0.s8 %v46
  %v48 = vlaneseq
  %v49 = vshrl.u32 %v48, 7
  %v50 = vsub.s32 %v47, %v49
  %v51 = vrot.slane %v44, %v50
  %v53 = vunpack.c.l.s4 1966171168
  %v54 = vunpack.c.0.s8 %v53
  %v55 = vlaneseq
  %v56 = vshrl.u32 %v55, 7
  %v57 = vsub.s32 %v54, %v56
  %v58 = vrot.slane %v51, %v57
  %v60 = vsub.f32 %v14, %v58
  %v61 = vmul.f32 %v15, %v60
  %v63 = vlaneseq
  %v64 = vshrl.u32 %v63, 7
  %v65 = vsub.s32 0, %v64
  %v66 = vrot.slane %v61, %v65
  %v67 = vlaneseq
  %v68 = vshrl.u32 %v67, 7
  %v69 = vsub.s32 1, %v68
  %v70 = vrot.slane %v61, %v69
  %v73 = vadd.f32 %v41, %v66
  %v74 = vadd.f32 %v40, %v70
  %75 = vrot.lane.b32.xlu0 %v26, 127
  %v76 = vpop.permute.xlu0 %75
  %77 = vrot.lane.b32.xlu0 %v30, 127
  %v78 = vpop.permute.xlu0 %77
  %vm79 = vcmp.lt.s32.totalorder %v38, 127
  %v80 = vsel %vm79, %v76, %v78
  %v81 = vsel %vm79, %v78, %v76
  %v84 = vcombine.low %v80, %v81
  %v86 = vunpack.c.l.s4 1966171168
  %v87 = vunpack.c.0.s8 %v86
  %v88 = vlaneseq
  %v89 = vshrl.u32 %v88, 7
  %v90 = vsub.s32 %v87, %v89
  %v91 = vrot.slane %v84, %v90
  %v93 = vunpack.c.l.s4 1966171168
  %v94 = vunpack.c.0.s8 %v93
  %v95 = vlaneseq
  %v96 = vshrl.u32 %v95, 7
  %v97 = vsub.s32 %v94, %v96
  %v98 = vrot.slane %v91, %v97
  %v100 = vsub.f32 %v14, %v98
  %v101 = vmul.f32 %v17, %v100
  %v103 = vlaneseq
  %v104 = vshrl.u32 %v103, 7
  %v105 = vsub.s32 0, %v104
  %v106 = vrot.slane %v101, %v105
  %v107 = vlaneseq
  %v108 = vshrl.u32 %v107, 7
  %v109 = vsub.s32 1, %v108
  %v110 = vrot.slane %v101, %v109
  %v113 = vadd.f32 %v80, %v106
  %v114 = vadd.f32 %v81, %v110
  %115 = vrot.lane.b32.xlu0 %v73, 12
  %v116 = vpop.permute.xlu0 %115
  %117 = vrot.lane.b32.xlu0 %v74, 12
  %v118 = vpop.permute.xlu0 %117
  %vm119 = vcmp.lt.s32.totalorder %v38, 12
  %v120 = vsel %vm119, %v116, %v118
  %v121 = vsel %vm119, %v118, %v116
  %v122 = vsub.f32 %v73, %v121
  %v123 = vsub.f32 %v74, %v120
  %v126 = vcombine.low %v122, %v123
  %v128 = vunpack.c.l.s4 1966171168
  %v129 = vunpack.c.0.s8 %v128
  %v130 = vlaneseq
  %v131 = vshrl.u32 %v130, 7
  %v132 = vsub.s32 %v129, %v131
  %v133 = vrot.slane %v126, %v132
  %v135 = vunpack.c.l.s4 1966171168
  %v136 = vunpack.c.0.s8 %v135
  %v137 = vlaneseq
  %v138 = vshrl.u32 %v137, 7
  %v139 = vsub.s32 %v136, %v138
  %v140 = vrot.slane %v133, %v139
  %v142 = vmul.f32 %v19, %v140
  %v144 = vlaneseq
  %v145 = vshrl.u32 %v144, 7
  %v146 = vsub.s32 0, %v145
  %v147 = vrot.slane %v142, %v146
  %v148 = vlaneseq
  %v149 = vshrl.u32 %v148, 7
  %v150 = vsub.s32 1, %v149
  %v151 = vrot.slane %v142, %v150
  %v154 = vadd.f32 %v121, %v147
  %v155 = vadd.f32 %v120, %v151
  %v158 = vcombine.low %v154, %v155
  %v160 = vunpack.c.l.s4 1966171168
  %v161 = vunpack.c.0.s8 %v160
  %v162 = vlaneseq
  %v163 = vshrl.u32 %v162, 7
  %v164 = vsub.s32 %v161, %v163
  %v165 = vrot.slane %v158, %v164
  %v167 = vunpack.c.l.s4 1966171168
  %v168 = vunpack.c.0.s8 %v167
  %v169 = vlaneseq
  %v170 = vshrl.u32 %v169, 7
  %v171 = vsub.s32 %v168, %v170
  %v172 = vrot.slane %v165, %v171
  %v174 = vlaneseq
  %vm175 = vcmp.ge.s32.totalorder %v174, 0
  %vm176 = vcmp.lt.s32.totalorder %v174, 144
  %vm177 = vmand %vm175, %vm176
  %178 = vst.msk [vmem:[#allocation2] ss:$8 sm:$0x3] %vm177, %v172
  %179 = vst.msk [vmem:[#allocation2] ss:$8 sm:$0x0] %vm177, %v172
  %180 = vrot.lane.b32.xlu0 %v26, 12
  %v181 = vpop.permute.xlu0 %180
  %182 = vrot.lane.b32.xlu0 %v30, 12
  %v183 = vpop.permute.xlu0 %182
  %v184 = vsel %vm119, %v181, %v183
  %v185 = vsel %vm119, %v183, %v181
  %v188 = vcombine.low %v185, %v184
  %v190 = vunpack.c.l.s4 1966171168
  %v191 = vunpack.c.0.s8 %v190
  %v192 = vlaneseq
  %v193 = vshrl.u32 %v192, 7
  %v194 = vsub.s32 %v191, %v193
  %v195 = vrot.slane %v188, %v194
  %v197 = vunpack.c.l.s4 1966171168
  %v198 = vunpack.c.0.s8 %v197
  %v199 = vlaneseq
  %v200 = vshrl.u32 %v199, 7
  %v201 = vsub.s32 %v198, %v200
  %v202 = vrot.slane %v195, %v201
  %v204 = vsub.f32 %v14, %v202
  %v205 = vmul.f32 %v19, %v204
  %v207 = vlaneseq
  %v208 = vshrl.u32 %v207, 7
  %v209 = vsub.s32 0, %v208
  %v210 = vrot.slane %v205, %v209
  %v211 = vlaneseq
  %v212 = vshrl.u32 %v211, 7
  %v213 = vsub.s32 1, %v212
  %v214 = vrot.slane %v205, %v213
  %v217 = vadd.f32 %v185, %v210
  %v218 = vadd.f32 %v184, %v214
  %v221 = vcombine.low %v217, %v218
  %v223 = vunpack.c.l.s4 1966171168
  %v224 = vunpack.c.0.s8 %v223
  %v225 = vlaneseq
  %v226 = vshrl.u32 %v225, 7
  %v227 = vsub.s32 %v224, %v226
  %v228 = vrot.slane %v221, %v227
  %v230 = vunpack.c.l.s4 1966171168
  %v231 = vunpack.c.0.s8 %v230
  %v232 = vlaneseq
  %v233 = vshrl.u32 %v232, 7
  %v234 = vsub.s32 %v231, %v233
  %v235 = vrot.slane %v228, %v234
  %s237 = scalar_lea.vmem [#allocation2], 1
  %238 = vst.msk [vmem:[%s237] ss:$8 sm:$0x3] %vm177, %v235
  %239 = vst.msk [vmem:[%s237] ss:$8 sm:$0x0] %vm177, %v235
  %240 = vrot.lane.b32.xlu0 %v113, 12
  %v241 = vpop.permute.xlu0 %240
  %242 = vrot.lane.b32.xlu0 %v114, 12
  %v243 = vpop.permute.xlu0 %242
  %v244 = vsel %vm119, %v241, %v243
  %v245 = vsel %vm119, %v243, %v241
  %v246 = vsub.f32 %v113, %v245
  %v247 = vsub.f32 %v114, %v244
  %v250 = vcombine.low %v246, %v247
  %v252 = vunpack.c.l.s4 1966171168
  %v253 = vunpack.c.0.s8 %v252
  %v254 = vlaneseq
  %v255 = vshrl.u32 %v254, 7
  %v256 = vsub.s32 %v253, %v255
  %v257 = vrot.slane %v250, %v256
  %v259 = vunpack.c.l.s4 1966171168
  %v260 = vunpack.c.0.s8 %v259
  %v261 = vlaneseq
  %v262 = vshrl.u32 %v261, 7
  %v263 = vsub.s32 %v260, %v262
  %v264 = vrot.slane %v257, %v263
  %v266 = vmul.f32 %v19, %v264
  %v268 = vlaneseq
  %v269 = vshrl.u32 %v268, 7
  %v270 = vsub.s32 0, %v269
  %v271 = vrot.slane %v266, %v270
  %v272 = vlaneseq
  %v273 = vshrl.u32 %v272, 7
  %v274 = vsub.s32 1, %v273
  %v275 = vrot.slane %v266, %v274
  %v278 = vadd.f32 %v245, %v271
  %v279 = vadd.f32 %v244, %v275
  %v282 = vcombine.low %v278, %v279
  %v284 = vunpack.c.l.s4 1966171168
  %v285 = vunpack.c.0.s8 %v284
  %v286 = vlaneseq
  %v287 = vshrl.u32 %v286, 7
  %v288 = vsub.s32 %v285, %v287
  %v289 = vrot.slane %v282, %v288
  %v291 = vunpack.c.l.s4 1966171168
  %v292 = vunpack.c.0.s8 %v291
  %v293 = vlaneseq
  %v294 = vshrl.u32 %v293, 7
  %v295 = vsub.s32 %v292, %v294
  %v296 = vrot.slane %v289, %v295
  %s298 = scalar_lea.vmem [#allocation2], 2
  %299 = vst.msk [vmem:[%s298] ss:$8 sm:$0x3] %vm177, %v296
  %300 = vst.msk [vmem:[%s298] ss:$8 sm:$0x0] %vm177, %v296
  %v303 = vcombine.low %v73, %v74
  %v305 = vunpack.c.l.s4 1966171168
  %v306 = vunpack.c.0.s8 %v305
  %v307 = vlaneseq
  %v308 = vshrl.u32 %v307, 7
  %v309 = vsub.s32 %v306, %v308
  %v310 = vrot.slane %v303, %v309
  %v312 = vunpack.c.l.s4 1966171168
  %v313 = vunpack.c.0.s8 %v312
  %v314 = vlaneseq
  %v315 = vshrl.u32 %v314, 7
  %v316 = vsub.s32 %v313, %v315
  %v317 = vrot.slane %v310, %v316
  %s319 = scalar_lea.vmem [#allocation2], 3
  %320 = vst.msk [vmem:[%s319] ss:$8 sm:$0x3] %vm177, %v317
  %321 = vst.msk [vmem:[%s319] ss:$8 sm:$0x0] %vm177, %v317
  %s322 = scalar_lea.vmem [#allocation2], 4
  %323 = vst.msk [vmem:[%s322] ss:$8 sm:$0x3] %vm177, %v14
  %324 = vst.msk [vmem:[%s322] ss:$8 sm:$0x0] %vm177, %v14
  %v327 = vcombine.low %v113, %v114
  %v329 = vunpack.c.l.s4 1966171168
  %v330 = vunpack.c.0.s8 %v329
  %v331 = vlaneseq
  %v332 = vshrl.u32 %v331, 7
  %v333 = vsub.s32 %v330, %v332
  %v334 = vrot.slane %v327, %v333
  %v336 = vunpack.c.l.s4 1966171168
  %v337 = vunpack.c.0.s8 %v336
  %v338 = vlaneseq
  %v339 = vshrl.u32 %v338, 7
  %v340 = vsub.s32 %v337, %v339
  %v341 = vrot.slane %v334, %v340
  %s343 = scalar_lea.vmem [#allocation2], 5
  %344 = vst.msk [vmem:[%s343] ss:$8 sm:$0x3] %vm177, %v341
  %345 = vst.msk [vmem:[%s343] ss:$8 sm:$0x0] %vm177, %v341
  %346 = vrot.lane.b32.xlu0 %v73, 116
  %v347 = vpop.permute.xlu0 %346
  %348 = vrot.lane.b32.xlu0 %v74, 116
  %v349 = vpop.permute.xlu0 %348
  %vm350 = vcmp.lt.s32.totalorder %v38, 116
  %v351 = vsel %vm350, %v347, %v349
  %v352 = vsel %vm350, %v349, %v347
  %v353 = vsub.f32 %v73, %v351
  %v354 = vsub.f32 %v74, %v352
  %v357 = vcombine.low %v353, %v354
  %v359 = vunpack.c.l.s4 1966171168
  %v360 = vunpack.c.0.s8 %v359
  %v361 = vlaneseq
  %v362 = vshrl.u32 %v361, 7
  %v363 = vsub.s32 %v360, %v362
  %v364 = vrot.slane %v357, %v363
  %v366 = vunpack.c.l.s4 1966171168
  %v367 = vunpack.c.0.s8 %v366
  %v368 = vlaneseq
  %v369 = vshrl.u32 %v368, 7
  %v370 = vsub.s32 %v367, %v369
  %v371 = vrot.slane %v364, %v370
  %v373 = vmul.f32 %v21, %v371
  %v375 = vlaneseq
  %v376 = vshrl.u32 %v375, 7
  %v377 = vsub.s32 0, %v376
  %v378 = vrot.slane %v373, %v377
  %v379 = vlaneseq
  %v380 = vshrl.u32 %v379, 7
  %v381 = vsub.s32 1, %v380
  %v382 = vrot.slane %v373, %v381
  %v385 = vadd.f32 %v351, %v378
  %v386 = vadd.f32 %v352, %v382
  %v389 = vcombine.low %v385, %v386
  %v391 = vunpack.c.l.s4 1966171168
  %v392 = vunpack.c.0.s8 %v391
  %v393 = vlaneseq
  %v394 = vshrl.u32 %v393, 7
  %v395 = vsub.s32 %v392, %v394
  %v396 = vrot.slane %v389, %v395
  %v398 = vunpack.c.l.s4 1966171168
  %v399 = vunpack.c.0.s8 %v398
  %v400 = vlaneseq
  %v401 = vshrl.u32 %v400, 7
  %v402 = vsub.s32 %v399, %v401
  %v403 = vrot.slane %v396, %v402
  %s405 = scalar_lea.vmem [#allocation2], 6
  %406 = vst.msk [vmem:[%s405] ss:$8 sm:$0x3] %vm177, %v403
  %407 = vst.msk [vmem:[%s405] ss:$8 sm:$0x0] %vm177, %v403
  %408 = vrot.lane.b32.xlu0 %v26, 116
  %v409 = vpop.permute.xlu0 %408
  %410 = vrot.lane.b32.xlu0 %v30, 116
  %v411 = vpop.permute.xlu0 %410
  %v412 = vsel %vm350, %v409, %v411
  %v413 = vsel %vm350, %v411, %v409
  %v416 = vcombine.low %v412, %v413
  %v418 = vunpack.c.l.s4 1966171168
  %v419 = vunpack.c.0.s8 %v418
  %v420 = vlaneseq
  %v421 = vshrl.u32 %v420, 7
  %v422 = vsub.s32 %v419, %v421
  %v423 = vrot.slane %v416, %v422
  %v425 = vunpack.c.l.s4 1966171168
  %v426 = vunpack.c.0.s8 %v425
  %v427 = vlaneseq
  %v428 = vshrl.u32 %v427, 7
  %v429 = vsub.s32 %v426, %v428
  %v430 = vrot.slane %v423, %v429
  %v432 = vsub.f32 %v14, %v430
  %v433 = vmul.f32 %v21, %v432
  %v435 = vlaneseq
  %v436 = vshrl.u32 %v435, 7
  %v437 = vsub.s32 0, %v436
  %v438 = vrot.slane %v433, %v437
  %v439 = vlaneseq
  %v440 = vshrl.u32 %v439, 7
  %v441 = vsub.s32 1, %v440
  %v442 = vrot.slane %v433, %v441
  %v445 = vadd.f32 %v412, %v438
  %v446 = vadd.f32 %v413, %v442
  %v449 = vcombine.low %v445, %v446
  %v451 = vunpack.c.l.s4 1966171168
  %v452 = vunpack.c.0.s8 %v451
  %v453 = vlaneseq
  %v454 = vshrl.u32 %v453, 7
  %v455 = vsub.s32 %v452, %v454
  %v456 = vrot.slane %v449, %v455
  %v458 = vunpack.c.l.s4 1966171168
  %v459 = vunpack.c.0.s8 %v458
  %v460 = vlaneseq
  %v461 = vshrl.u32 %v460, 7
  %v462 = vsub.s32 %v459, %v461
  %v463 = vrot.slane %v456, %v462
  %s465 = scalar_lea.vmem [#allocation2], 7
  %466 = vst.msk [vmem:[%s465] ss:$8 sm:$0x3] %vm177, %v463
  %467 = vst.msk [vmem:[%s465] ss:$8 sm:$0x0] %vm177, %v463
  %468 = vrot.lane.b32.xlu0 %v113, 116
  %v469 = vpop.permute.xlu0 %468
  %470 = vrot.lane.b32.xlu0 %v114, 116
  %v471 = vpop.permute.xlu0 %470
  %v472 = vsel %vm350, %v469, %v471
  %v473 = vsel %vm350, %v471, %v469
  %v474 = vsub.f32 %v113, %v472
  %v475 = vsub.f32 %v114, %v473
  %v478 = vcombine.low %v474, %v475
  %v480 = vunpack.c.l.s4 1966171168
  %v481 = vunpack.c.0.s8 %v480
  %v482 = vlaneseq
  %v483 = vshrl.u32 %v482, 7
  %v484 = vsub.s32 %v481, %v483
  %v485 = vrot.slane %v478, %v484
  %v487 = vunpack.c.l.s4 1966171168
  %v488 = vunpack.c.0.s8 %v487
  %v489 = vlaneseq
  %v490 = vshrl.u32 %v489, 7
  %v491 = vsub.s32 %v488, %v490
  %v492 = vrot.slane %v485, %v491
  %v494 = vmul.f32 %v21, %v492
  %v496 = vlaneseq
  %v497 = vshrl.u32 %v496, 7
  %v498 = vsub.s32 0, %v497
  %v499 = vrot.slane %v494, %v498
  %v500 = vlaneseq
  %v501 = vshrl.u32 %v500, 7
  %v502 = vsub.s32 1, %v501
  %v503 = vrot.slane %v494, %v502
  %v506 = vadd.f32 %v472, %v499
  %v507 = vadd.f32 %v473, %v503
  %v510 = vcombine.low %v506, %v507
  %v512 = vunpack.c.l.s4 1966171168
  %v513 = vunpack.c.0.s8 %v512
  %v514 = vlaneseq
  %v515 = vshrl.u32 %v514, 7
  %v516 = vsub.s32 %v513, %v515
  %v517 = vrot.slane %v510, %v516
  %v519 = vunpack.c.l.s4 1966171168
  %v520 = vunpack.c.0.s8 %v519
  %v521 = vlaneseq
  %v522 = vshrl.u32 %v521, 7
  %v523 = vsub.s32 %v520, %v522
  %v524 = vrot.slane %v517, %v523
  %s526 = scalar_lea.vmem [#allocation2], 16
  %527 = vst.msk [vmem:[%s526] ss:$8 sm:$0x3] %vm177, %v524
  %528 = vst.msk [vmem:[%s526] ss:$8 sm:$0x0] %vm177, %v524
  %s529 = scalar_lea.vmem [#allocation2], 17
  %530 = vst.msk [vmem:[%s529] ss:$8 sm:$0x3] %vm177, %v14
  %531 = vst.msk [vmem:[%s529] ss:$8 sm:$0x0] %vm177, %v14
  %s532 = scalar_lea.vmem [#allocation2], 18
  %533 = vst.msk [vmem:[%s532] ss:$8 sm:$0x3] %vm177, 1.0
  %534 = vst.msk [vmem:[%s532] ss:$8 sm:$0x0] %vm177, 1.0
  %v535 = vld [vmem:[%s1] sm:$0xff]
  %v536 = vld [vmem:[%s1 + $0x8] sm:$0xff]
  %v537 = vld [vmem:[%s1 + $0x10] sm:$0x7]
  %v538 = vld [vmem:[%s1 + $0x18] sm:$0x7]
  %v539 = vld [vmem:[#allocation2] sm:$0xff]
  %v540 = vld [vmem:[#allocation2 + $0x8] sm:$0xff]
  %v541 = vld [vmem:[#allocation2 + $0x10] sm:$0x7]
  %v542 = vld [vmem:[#allocation2 + $0x18] sm:$0x7]
  %543 = vxpose.xlu0.b32.start [1/16] %v535, 128
  %544 = vxpose.xlu0.b32.cont [2/16] %v537, 128
  %545 = vxpose.xlu0.b32.cont [3/16] 0.0, 128
  %546 = vxpose.xlu0.b32.cont [4/16] 0.0, 128
  %547 = vxpose.xlu0.b32.cont [5/16] 0.0, 128
  %548 = vxpose.xlu0.b32.cont [6/16] 0.0, 128
  %549 = vxpose.xlu0.b32.cont [7/16] 0.0, 128
  %550 = vxpose.xlu0.b32.cont [8/16] 0.0, 128
  %551 = vxpose.xlu0.b32.cont [9/16] 0.0, 128
  %552 = vxpose.xlu0.b32.cont [10/16] 0.0, 128
  %553 = vxpose.xlu0.b32.cont [11/16] 0.0, 128
  %554 = vxpose.xlu0.b32.cont [12/16] 0.0, 128
  %555 = vxpose.xlu0.b32.cont [13/16] 0.0, 128
  %556 = vxpose.xlu0.b32.cont [14/16] 0.0, 128
  %557 = vxpose.xlu0.b32.cont [15/16] 0.0, 128
  %558 = vxpose.xlu0.b32.end [16/16] 0.0, 128
  %v559 = vpop.trf.xlu0
  %v560 = vpop.trf.xlu0
  %v561 = vpop.trf.xlu0
  %v562 = vpop.trf.xlu0
  %v563 = vpop.trf.xlu0
  %v564 = vpop.trf.xlu0
  %v565 = vpop.trf.xlu0
  %v566 = vpop.trf.xlu0
  %v567 = vpop.trf.xlu0
  %v568 = vpop.trf.xlu0
  %v569 = vpop.trf.xlu0
  %v570 = vpop.trf.xlu0
  %v571 = vpop.trf.xlu0
  %v572 = vpop.trf.xlu0
  %v573 = vpop.trf.xlu0
  %v574 = vpop.trf.xlu0
  %575 = vxpose.xlu0.b32.start [1/16] %v536, 128
  %576 = vxpose.xlu0.b32.cont [2/16] %v538, 128
  %577 = vxpose.xlu0.b32.cont [3/16] 0.0, 128
  %578 = vxpose.xlu0.b32.cont [4/16] 0.0, 128
  %579 = vxpose.xlu0.b32.cont [5/16] 0.0, 128
  %580 = vxpose.xlu0.b32.cont [6/16] 0.0, 128
  %581 = vxpose.xlu0.b32.cont [7/16] 0.0, 128
  %582 = vxpose.xlu0.b32.cont [8/16] 0.0, 128
  %583 = vxpose.xlu0.b32.cont [9/16] 0.0, 128
  %584 = vxpose.xlu0.b32.cont [10/16] 0.0, 128
  %585 = vxpose.xlu0.b32.cont [11/16] 0.0, 128
  %586 = vxpose.xlu0.b32.cont [12/16] 0.0, 128
  %587 = vxpose.xlu0.b32.cont [13/16] 0.0, 128
  %588 = vxpose.xlu0.b32.cont [14/16] 0.0, 128
  %589 = vxpose.xlu0.b32.cont [15/16] 0.0, 128
  %590 = vxpose.xlu0.b32.end [16/16] 0.0, 128
  %v591 = vpop.trf.xlu0
  %v592 = vpop.trf.xlu0
  %v593 = vpop.trf.xlu0
  %v594 = vpop.trf.xlu0
  %v595 = vpop.trf.xlu0
  %v596 = vpop.trf.xlu0
  %v597 = vpop.trf.xlu0
  %v598 = vpop.trf.xlu0
  %v599 = vpop.trf.xlu0
  %v600 = vpop.trf.xlu0
  %v601 = vpop.trf.xlu0
  %v602 = vpop.trf.xlu0
  %v603 = vpop.trf.xlu0
  %v604 = vpop.trf.xlu0
  %v605 = vpop.trf.xlu0
  %v606 = vpop.trf.xlu0
  %vm607 = vcmask 89088
  %v609 = vsel %vm607, %v559, 0
  %v612 = vsel %vm607, %v560, 0
  %v615 = vsel %vm607, %v561, 0
  %v618 = vsel %vm607, %v562, 0
  %v621 = vsel %vm607, %v563, 0
  %v624 = vsel %vm607, %v564, 0
  %v627 = vsel %vm607, %v565, 0
  %v630 = vsel %vm607, %v566, 0
  %v633 = vsel %vm607, %v567, 0
  %v636 = vsel %vm607, %v568, 0
  %v639 = vsel %vm607, %v569, 0
  %v642 = vsel %vm607, %v570, 0
  %v645 = vsel %vm607, %v571, 0
  %v648 = vsel %vm607, %v572, 0
  %v651 = vsel %vm607, %v573, 0
  %v654 = vsel %vm607, %v574, 0
  %v657 = vsel %vm607, %v591, 0
  %v660 = vsel %vm607, %v592, 0
  %v663 = vsel %vm607, %v593, 0
  %v666 = vsel %vm607, %v594, 0
  %v669 = vsel %vm607, %v595, 0
  %v672 = vsel %vm607, %v596, 0
  %v675 = vsel %vm607, %v597, 0
  %v678 = vsel %vm607, %v598, 0
  %v681 = vsel %vm607, %v599, 0
  %v684 = vsel %vm607, %v600, 0
  %v687 = vsel %vm607, %v601, 0
  %v690 = vsel %vm607, %v602, 0
  %v693 = vsel %vm607, %v603, 0
  %v696 = vsel %vm607, %v604, 0
  %v699 = vsel %vm607, %v605, 0
  %v702 = vsel %vm607, %v606, 0
  %vm704 = vcmask 1042432
  %v706 = vsel %vm704, %v541, 0
  %v709 = vsel %vm704, %v542, 0
  %711 = vmatprep.subr.mxu0 %v540
  %712 = vmatpush1.msra.mxu0 %v539
  %713 = vmatprep.subr.mxu0 %v709
  %714 = vmatpush1.msra.mxu0 %v706
  %715 = vmatprep.subr.mxu0 0.0
  %716 = vmatpush1.msra.mxu0 0.0
  %717 = vmatprep.subr.mxu0 0.0
  %718 = vmatpush1.msra.mxu0 0.0
  %719 = vmatprep.subr.mxu0 0.0
  %720 = vmatpush1.msra.mxu0 0.0
  %721 = vmatprep.subr.mxu0 0.0
  %722 = vmatpush1.msra.mxu0 0.0
  %723 = vmatprep.subr.mxu0 0.0
  %724 = vmatpush1.msra.mxu0 0.0
  %725 = vmatprep.subr.mxu0 0.0
  %726 = vmatpush1.msra.mxu0 0.0
  %727 = vmatprep.subr.mxu0 0.0
  %728 = vmatpush1.msra.mxu0 0.0
  %729 = vmatprep.subr.mxu0 0.0
  %730 = vmatpush1.msra.mxu0 0.0
  %731 = vmatprep.subr.mxu0 0.0
  %732 = vmatpush1.msra.mxu0 0.0
  %733 = vmatprep.subr.mxu0 0.0
  %734 = vmatpush1.msra.mxu0 0.0
  %735 = vmatprep.subr.mxu0 0.0
  %736 = vmatpush1.msra.mxu0 0.0
  %737 = vmatprep.subr.mxu0 0.0
  %738 = vmatpush1.msra.mxu0 0.0
  %739 = vmatprep.subr.mxu0 0.0
  %740 = vmatpush1.msra.mxu0 0.0
  %741 = vmatprep.subr.mxu0 0.0
  %742 = vmatpush1.msra.mxu0 0.0
  %743 = vmatprep.subr.mxu0 0.0
  %744 = vmatpush1.msra.mxu0 0.0
  %745 = vmatprep.subr.mxu0 0.0
  %746 = vmatpush1.msra.mxu0 0.0
  %747 = vmatprep.subr.mxu0 0.0
  %748 = vmatpush1.msra.mxu0 0.0
  %749 = vmatprep.subr.mxu0 0.0
  %750 = vmatpush1.msra.mxu0 0.0
  %751 = vmatprep.subr.mxu0 0.0
  %752 = vmatpush1.msra.mxu0 0.0
  %753 = vmatprep.subr.mxu0 0.0
  %754 = vmatpush1.msra.mxu0 0.0
  %755 = vmatprep.subr.mxu0 0.0
  %756 = vmatpush1.msra.mxu0 0.0
  %757 = vmatprep.subr.mxu0 0.0
  %758 = vmatpush1.msra.mxu0 0.0
  %759 = vmatprep.subr.mxu0 0.0
  %760 = vmatpush1.msra.mxu0 0.0
  %761 = vmatprep.subr.mxu0 0.0
  %762 = vmatpush1.msra.mxu0 0.0
  %763 = vmatprep.subr.mxu0 0.0
  %764 = vmatpush1.msra.mxu0 0.0
  %765 = vmatprep.subr.mxu0 0.0
  %766 = vmatpush1.msra.mxu0 0.0
  %767 = vmatprep.subr.mxu0 0.0
  %768 = vmatpush1.msra.mxu0 0.0
  %769 = vmatprep.subr.mxu0 0.0
  %770 = vmatpush1.msra.mxu0 0.0
  %771 = vmatprep.subr.mxu0 0.0
  %772 = vmatpush1.msra.mxu0 0.0
  %773 = vmatprep.subr.mxu0 0.0
  %774 = vmatpush1.msra.mxu0 0.0
  %775 = vmatprep.mubr.f32.mxu0 0.0
  %776 = vmatmul.mubr.f32.gmra.mrb[0].mxu0 %v609
  %v777 = vpop.f32.mrb[0].mxu0
  %v778 = vadd.f32 0.0, %v777
  %v779 = vpop.f32.mrb[0].mxu0
  %v780 = vadd.f32 0.0, %v779
  %781 = vmatprep.mubr.f32.mxu0 0.0
  %782 = vmatmul.mubr.f32.gmra.mrb[0].mxu0 %v612
  %v783 = vpop.f32.mrb[0].mxu0
  %v784 = vadd.f32 0.0, %v783
  %v785 = vpop.f32.mrb[0].mxu0
  %v786 = vadd.f32 0.0, %v785
  %787 = vmatprep.mubr.f32.mxu0 0.0
  %788 = vmatmul.mubr.f32.gmra.mrb[0].mxu0 %v615
  %v789 = vpop.f32.mrb[0].mxu0
  %v790 = vadd.f32 0.0, %v789
  %v791 = vpop.f32.mrb[0].mxu0
  %v792 = vadd.f32 0.0, %v791
  %793 = vmatprep.mubr.f32.mxu0 0.0
  %794 = vmatmul.mubr.f32.gmra.mrb[0].mxu0 %v618
  %v795 = vpop.f32.mrb[0].mxu0
  %v796 = vadd.f32 0.0, %v795
  %v797 = vpop.f32.mrb[0].mxu0
  %v798 = vadd.f32 0.0, %v797
  %799 = vmatprep.mubr.f32.mxu0 0.0
  %800 = vmatmul.mubr.f32.gmra.mrb[0].mxu0 %v621
  %v801 = vpop.f32.mrb[0].mxu0
  %v802 = vadd.f32 0.0, %v801
  %v803 = vpop.f32.mrb[0].mxu0
  %v804 = vadd.f32 0.0, %v803
  %805 = vmatprep.mubr.f32.mxu0 0.0
  %806 = vmatmul.mubr.f32.gmra.mrb[0].mxu0 %v624
  %v807 = vpop.f32.mrb[0].mxu0
  %v808 = vadd.f32 0.0, %v807
  %v809 = vpop.f32.mrb[0].mxu0
  %v810 = vadd.f32 0.0, %v809
  %811 = vmatprep.mubr.f32.mxu0 0.0
  %812 = vmatmul.mubr.f32.gmra.mrb[0].mxu0 %v627
  %v813 = vpop.f32.mrb[0].mxu0
  %v814 = vadd.f32 0.0, %v813
  %v815 = vpop.f32.mrb[0].mxu0
  %v816 = vadd.f32 0.0, %v815
  %817 = vmatprep.mubr.f32.mxu0 0.0
  %818 = vmatmul.mubr.f32.gmra.mrb[0].mxu0 %v630
  %v819 = vpop.f32.mrb[0].mxu0
  %v820 = vadd.f32 0.0, %v819
  %v821 = vpop.f32.mrb[0].mxu0
  %v822 = vadd.f32 0.0, %v821
  %823 = vmatprep.mubr.f32.mxu0 0.0
  %824 = vmatmul.mubr.f32.gmra.mrb[0].mxu0 %v633
  %v825 = vpop.f32.mrb[0].mxu0
  %v826 = vadd.f32 0.0, %v825
  %v827 = vpop.f32.mrb[0].mxu0
  %v828 = vadd.f32 0.0, %v827
  %829 = vmatprep.mubr.f32.mxu0 0.0
  %830 = vmatmul.mubr.f32.gmra.mrb[0].mxu0 %v636
  %v831 = vpop.f32.mrb[0].mxu0
  %v832 = vadd.f32 0.0, %v831
  %v833 = vpop.f32.mrb[0].mxu0
  %v834 = vadd.f32 0.0, %v833
  %835 = vmatprep.mubr.f32.mxu0 0.0
  %836 = vmatmul.mubr.f32.gmra.mrb[0].mxu0 %v639
  %v837 = vpop.f32.mrb[0].mxu0
  %v838 = vadd.f32 0.0, %v837
  %v839 = vpop.f32.mrb[0].mxu0
  %v840 = vadd.f32 0.0, %v839
  %841 = vmatprep.mubr.f32.mxu0 0.0
  %842 = vmatmul.mubr.f32.gmra.mrb[0].mxu0 %v642
  %v843 = vpop.f32.mrb[0].mxu0
  %v844 = vadd.f32 0.0, %v843
  %v845 = vpop.f32.mrb[0].mxu0
  %v846 = vadd.f32 0.0, %v845
  %847 = vmatprep.mubr.f32.mxu0 0.0
  %848 = vmatmul.mubr.f32.gmra.mrb[0].mxu0 %v645
  %v849 = vpop.f32.mrb[0].mxu0
  %v850 = vadd.f32 0.0, %v849
  %v851 = vpop.f32.mrb[0].mxu0
  %v852 = vadd.f32 0.0, %v851
  %853 = vmatprep.mubr.f32.mxu0 0.0
  %854 = vmatmul.mubr.f32.gmra.mrb[0].mxu0 %v648
  %v855 = vpop.f32.mrb[0].mxu0
  %v856 = vadd.f32 0.0, %v855
  %v857 = vpop.f32.mrb[0].mxu0
  %v858 = vadd.f32 0.0, %v857
  %859 = vmatprep.mubr.f32.mxu0 0.0
  %860 = vmatmul.mubr.f32.gmra.mrb[0].mxu0 %v651
  %v861 = vpop.f32.mrb[0].mxu0
  %v862 = vadd.f32 0.0, %v861
  %v863 = vpop.f32.mrb[0].mxu0
  %v864 = vadd.f32 0.0, %v863
  %865 = vmatprep.mubr.f32.mxu0 0.0
  %866 = vmatmul.mubr.f32.gmra.mrb[0].mxu0 %v654
  %v867 = vpop.f32.mrb[0].mxu0
  %v868 = vadd.f32 0.0, %v867
  %v869 = vpop.f32.mrb[0].mxu0
  %v870 = vadd.f32 0.0, %v869
  %871 = vmatprep.mubr.f32.mxu0 0.0
  %872 = vmatmul.mubr.f32.gmra.mrb[0].mxu0 %v657
  %v873 = vpop.f32.mrb[0].mxu0
  %v874 = vadd.f32 0.0, %v873
  %v875 = vpop.f32.mrb[0].mxu0
  %v876 = vadd.f32 0.0, %v875
  %877 = vmatprep.mubr.f32.mxu0 0.0
  %878 = vmatmul.mubr.f32.gmra.mrb[0].mxu0 %v660
  %v879 = vpop.f32.mrb[0].mxu0
  %v880 = vadd.f32 0.0, %v879
  %v881 = vpop.f32.mrb[0].mxu0
  %v882 = vadd.f32 0.0, %v881
  %883 = vmatprep.mubr.f32.mxu0 0.0
  %884 = vmatmul.mubr.f32.gmra.mrb[0].mxu0 %v663
  %v885 = vpop.f32.mrb[0].mxu0
  %v886 = vadd.f32 0.0, %v885
  %v887 = vpop.f32.mrb[0].mxu0
  %v888 = vadd.f32 0.0, %v887
  %889 = vmatprep.mubr.f32.mxu0 0.0
  %890 = vmatmul.mubr.f32.gmra.mrb[0].mxu0 %v666
  %v891 = vpop.f32.mrb[0].mxu0
  %v892 = vadd.f32 0.0, %v891
  %v893 = vpop.f32.mrb[0].mxu0
  %v894 = vadd.f32 0.0, %v893
  %895 = vmatprep.mubr.f32.mxu0 0.0
  %896 = vmatmul.mubr.f32.gmra.mrb[0].mxu0 %v669
  %v897 = vpop.f32.mrb[0].mxu0
  %v898 = vadd.f32 0.0, %v897
  %v899 = vpop.f32.mrb[0].mxu0
  %v900 = vadd.f32 0.0, %v899
  %901 = vmatprep.mubr.f32.mxu0 0.0
  %902 = vmatmul.mubr.f32.gmra.mrb[0].mxu0 %v672
  %v903 = vpop.f32.mrb[0].mxu0
  %v904 = vadd.f32 0.0, %v903
  %v905 = vpop.f32.mrb[0].mxu0
  %v906 = vadd.f32 0.0, %v905
  %907 = vmatprep.mubr.f32.mxu0 0.0
  %908 = vmatmul.mubr.f32.gmra.mrb[0].mxu0 %v675
  %v909 = vpop.f32.mrb[0].mxu0
  %v910 = vadd.f32 0.0, %v909
  %v911 = vpop.f32.mrb[0].mxu0
  %v912 = vadd.f32 0.0, %v911
  %913 = vmatprep.mubr.f32.mxu0 0.0
  %914 = vmatmul.mubr.f32.gmra.mrb[0].mxu0 %v678
  %v915 = vpop.f32.mrb[0].mxu0
  %v916 = vadd.f32 0.0, %v915
  %v917 = vpop.f32.mrb[0].mxu0
  %v918 = vadd.f32 0.0, %v917
  %919 = vmatprep.mubr.f32.mxu0 0.0
  %920 = vmatmul.mubr.f32.gmra.mrb[0].mxu0 %v681
  %v921 = vpop.f32.mrb[0].mxu0
  %v922 = vadd.f32 0.0, %v921
  %v923 = vpop.f32.mrb[0].mxu0
  %v924 = vadd.f32 0.0, %v923
  %925 = vmatprep.mubr.f32.mxu0 0.0
  %926 = vmatmul.mubr.f32.gmra.mrb[0].mxu0 %v684
  %v927 = vpop.f32.mrb[0].mxu0
  %v928 = vadd.f32 0.0, %v927
  %v929 = vpop.f32.mrb[0].mxu0
  %v930 = vadd.f32 0.0, %v929
  %931 = vmatprep.mubr.f32.mxu0 0.0
  %932 = vmatmul.mubr.f32.gmra.mrb[0].mxu0 %v687
  %v933 = vpop.f32.mrb[0].mxu0
  %v934 = vadd.f32 0.0, %v933
  %v935 = vpop.f32.mrb[0].mxu0
  %v936 = vadd.f32 0.0, %v935
  %937 = vmatprep.mubr.f32.mxu0 0.0
  %938 = vmatmul.mubr.f32.gmra.mrb[0].mxu0 %v690
  %v939 = vpop.f32.mrb[0].mxu0
  %v940 = vadd.f32 0.0, %v939
  %v941 = vpop.f32.mrb[0].mxu0
  %v942 = vadd.f32 0.0, %v941
  %943 = vmatprep.mubr.f32.mxu0 0.0
  %944 = vmatmul.mubr.f32.gmra.mrb[0].mxu0 %v693
  %v945 = vpop.f32.mrb[0].mxu0
  %v946 = vadd.f32 0.0, %v945
  %v947 = vpop.f32.mrb[0].mxu0
  %v948 = vadd.f32 0.0, %v947
  %949 = vmatprep.mubr.f32.mxu0 0.0
  %950 = vmatmul.mubr.f32.gmra.mrb[0].mxu0 %v696
  %v951 = vpop.f32.mrb[0].mxu0
  %v952 = vadd.f32 0.0, %v951
  %v953 = vpop.f32.mrb[0].mxu0
  %v954 = vadd.f32 0.0, %v953
  %955 = vmatprep.mubr.f32.mxu0 0.0
  %956 = vmatmul.mubr.f32.gmra.mrb[0].mxu0 %v699
  %v957 = vpop.f32.mrb[0].mxu0
  %v958 = vadd.f32 0.0, %v957
  %v959 = vpop.f32.mrb[0].mxu0
  %v960 = vadd.f32 0.0, %v959
  %961 = vmatprep.mubr.f32.mxu0 0.0
  %962 = vmatmul.mubr.f32.gmra.mrb[0].mxu0 %v702
  %v963 = vpop.f32.mrb[0].mxu0
  %v964 = vadd.f32 0.0, %v963
  %v965 = vpop.f32.mrb[0].mxu0
  %v966 = vadd.f32 0.0, %v965
  %967 = vdwg.mxu0
  %v968 = vmax.f32 %v778, 0.0
  %v969 = vmax.f32 %v780, 0.0
  %v970 = vmax.f32 %v784, 0.0
  %v971 = vmax.f32 %v786, 0.0
  %v972 = vmax.f32 %v790, 0.0
  %v973 = vmax.f32 %v792, 0.0
  %v974 = vmax.f32 %v796, 0.0
  %v975 = vmax.f32 %v798, 0.0
  %v976 = vmax.f32 %v802, 0.0
  %v977 = vmax.f32 %v804, 0.0
  %v978 = vmax.f32 %v808, 0.0
  %v979 = vmax.f32 %v810, 0.0
  %v980 = vmax.f32 %v814, 0.0
  %v981 = vmax.f32 %v816, 0.0
  %v982 = vmax.f32 %v820, 0.0
  %v983 = vmax.f32 %v822, 0.0
  %v984 = vmax.f32 %v826, 0.0
  %v985 = vmax.f32 %v828, 0.0
  %v986 = vmax.f32 %v832, 0.0
  %v987 = vmax.f32 %v834, 0.0
  %v988 = vmax.f32 %v838, 0.0
  %v989 = vmax.f32 %v840, 0.0
  %v990 = vmax.f32 %v844, 0.0
  %v991 = vmax.f32 %v846, 0.0
  %v992 = vmax.f32 %v850, 0.0
  %v993 = vmax.f32 %v852, 0.0
  %v994 = vmax.f32 %v856, 0.0
  %v995 = vmax.f32 %v858, 0.0
  %v996 = vmax.f32 %v862, 0.0
  %v997 = vmax.f32 %v864, 0.0
  %v998 = vmax.f32 %v868, 0.0
  %v999 = vmax.f32 %v870, 0.0
  %v1000 = vmax.f32 %v874, 0.0
  %v1001 = vmax.f32 %v876, 0.0
  %v1002 = vmax.f32 %v880, 0.0
  %v1003 = vmax.f32 %v882, 0.0
  %v1004 = vmax.f32 %v886, 0.0
  %v1005 = vmax.f32 %v888, 0.0
  %v1006 = vmax.f32 %v892, 0.0
  %v1007 = vmax.f32 %v894, 0.0
  %v1008 = vmax.f32 %v898, 0.0
  %v1009 = vmax.f32 %v900, 0.0
  %v1010 = vmax.f32 %v904, 0.0
  %v1011 = vmax.f32 %v906, 0.0
  %v1012 = vmax.f32 %v910, 0.0
  %v1013 = vmax.f32 %v912, 0.0
  %v1014 = vmax.f32 %v916, 0.0
  %v1015 = vmax.f32 %v918, 0.0
  %v1016 = vmax.f32 %v922, 0.0
  %v1017 = vmax.f32 %v924, 0.0
  %v1018 = vmax.f32 %v928, 0.0
  %v1019 = vmax.f32 %v930, 0.0
  %v1020 = vmax.f32 %v934, 0.0
  %v1021 = vmax.f32 %v936, 0.0
  %v1022 = vmax.f32 %v940, 0.0
  %v1023 = vmax.f32 %v942, 0.0
  %v1024 = vmax.f32 %v946, 0.0
  %v1025 = vmax.f32 %v948, 0.0
  %v1026 = vmax.f32 %v952, 0.0
  %v1027 = vmax.f32 %v954, 0.0
  %v1028 = vmax.f32 %v958, 0.0
  %v1029 = vmax.f32 %v960, 0.0
  %v1030 = vmax.f32 %v964, 0.0
  %v1031 = vmax.f32 %v966, 0.0
  %1032 = vst [vmem:[%s3] sm:$0xff] %v968
  %vm1033 = vcmask 130048
  %1034 = vst.msk [vmem:[%s3 + $0x8] sm:$0xff] %vm1033, %v969
  %1035 = vst [vmem:[%s3 + $0x10] sm:$0xff] %v970
  %1036 = vst.msk [vmem:[%s3 + $0x18] sm:$0xff] %vm1033, %v971
  %1037 = vst [vmem:[%s3 + $0x20] sm:$0xff] %v972
  %1038 = vst.msk [vmem:[%s3 + $0x28] sm:$0xff] %vm1033, %v973
  %1039 = vst [vmem:[%s3 + $0x30] sm:$0xff] %v974
  %1040 = vst.msk [vmem:[%s3 + $0x38] sm:$0xff] %vm1033, %v975
  %1041 = vst [vmem:[%s3 + $0x40] sm:$0xff] %v976
  %1042 = vst.msk [vmem:[%s3 + $0x48] sm:$0xff] %vm1033, %v977
  %1043 = vst [vmem:[%s3 + $0x50] sm:$0xff] %v978
  %1044 = vst.msk [vmem:[%s3 + $0x58] sm:$0xff] %vm1033, %v979
  %1045 = vst [vmem:[%s3 + $0x60] sm:$0xff] %v980
  %1046 = vst.msk [vmem:[%s3 + $0x68] sm:$0xff] %vm1033, %v981
  %1047 = vst [vmem:[%s3 + $0x70] sm:$0xff] %v982
  %1048 = vst.msk [vmem:[%s3 + $0x78] sm:$0xff] %vm1033, %v983
  %1049 = vst [vmem:[%s3 + $0x80] sm:$0xff] %v984
  %1050 = vst.msk [vmem:[%s3 + $0x88] sm:$0xff] %vm1033, %v985
  %1051 = vst [vmem:[%s3 + $0x90] sm:$0xff] %v986
  %1052 = vst.msk [vmem:[%s3 + $0x98] sm:$0xff] %vm1033, %v987
  %1053 = vst [vmem:[%s3 + $0xa0] sm:$0xff] %v988
  %1054 = vst.msk [vmem:[%s3 + $0xa8] sm:$0xff] %vm1033, %v989
  %1055 = vst [vmem:[%s3 + $0xb0] sm:$0xff] %v990
  %1056 = vst.msk [vmem:[%s3 + $0xb8] sm:$0xff] %vm1033, %v991
  %1057 = vst [vmem:[%s3 + $0xc0] sm:$0xff] %v992
  %1058 = vst.msk [vmem:[%s3 + $0xc8] sm:$0xff] %vm1033, %v993
  %1059 = vst [vmem:[%s3 + $0xd0] sm:$0xff] %v994
  %1060 = vst.msk [vmem:[%s3 + $0xd8] sm:$0xff] %vm1033, %v995
  %1061 = vst [vmem:[%s3 + $0xe0] sm:$0xff] %v996
  %1062 = vst.msk [vmem:[%s3 + $0xe8] sm:$0xff] %vm1033, %v997
  %1063 = vst [vmem:[%s3 + $0xf0] sm:$0xff] %v998
  %1064 = vst.msk [vmem:[%s3 + $0xf8] sm:$0xff] %vm1033, %v999
  %1065 = vst [vmem:[%s3 + $0x100] sm:$0xff] %v1000
  %1066 = vst.msk [vmem:[%s3 + $0x108] sm:$0xff] %vm1033, %v1001
  %1067 = vst [vmem:[%s3 + $0x110] sm:$0xff] %v1002
  %1068 = vst.msk [vmem:[%s3 + $0x118] sm:$0xff] %vm1033, %v1003
  %1069 = vst [vmem:[%s3 + $0x120] sm:$0xff] %v1004
  %1070 = vst.msk [vmem:[%s3 + $0x128] sm:$0xff] %vm1033, %v1005
  %1071 = vst [vmem:[%s3 + $0x130] sm:$0xff] %v1006
  %1072 = vst.msk [vmem:[%s3 + $0x138] sm:$0xff] %vm1033, %v1007
  %1073 = vst [vmem:[%s3 + $0x140] sm:$0xff] %v1008
  %1074 = vst.msk [vmem:[%s3 + $0x148] sm:$0xff] %vm1033, %v1009
  %1075 = vst [vmem:[%s3 + $0x150] sm:$0xff] %v1010
  %1076 = vst.msk [vmem:[%s3 + $0x158] sm:$0xff] %vm1033, %v1011
  %1077 = vst [vmem:[%s3 + $0x160] sm:$0xff] %v1012
  %1078 = vst.msk [vmem:[%s3 + $0x168] sm:$0xff] %vm1033, %v1013
  %1079 = vst [vmem:[%s3 + $0x170] sm:$0xff] %v1014
  %1080 = vst.msk [vmem:[%s3 + $0x178] sm:$0xff] %vm1033, %v1015
  %1081 = vst [vmem:[%s3 + $0x180] sm:$0xff] %v1016
  %1082 = vst.msk [vmem:[%s3 + $0x188] sm:$0xff] %vm1033, %v1017
  %1083 = vst [vmem:[%s3 + $0x190] sm:$0xff] %v1018
  %1084 = vst.msk [vmem:[%s3 + $0x198] sm:$0xff] %vm1033, %v1019
  %1085 = vst [vmem:[%s3 + $0x1a0] sm:$0xff] %v1020
  %1086 = vst.msk [vmem:[%s3 + $0x1a8] sm:$0xff] %vm1033, %v1021
  %1087 = vst [vmem:[%s3 + $0x1b0] sm:$0xff] %v1022
  %1088 = vst.msk [vmem:[%s3 + $0x1b8] sm:$0xff] %vm1033, %v1023
  %1089 = vst [vmem:[%s3 + $0x1c0] sm:$0xff] %v1024
  %1090 = vst.msk [vmem:[%s3 + $0x1c8] sm:$0xff] %vm1033, %v1025
  %1091 = vst [vmem:[%s3 + $0x1d0] sm:$0xff] %v1026
  %1092 = vst.msk [vmem:[%s3 + $0x1d8] sm:$0xff] %vm1033, %v1027
  %1093 = vst [vmem:[%s3 + $0x1e0] sm:$0xff] %v1028
  %1094 = vst.msk [vmem:[%s3 + $0x1e8] sm:$0xff] %vm1033, %v1029
  %1095 = vst [vmem:[%s3 + $0x1f0] sm:$0xff] %v1030
  %1096 = vst.msk [vmem:[%s3 + $0x1f8] sm:$0xff] %vm1033, %v1031
  // Predicated region
  $region14: #{model_forward.1} parent=0 // pred_check
    _
  $region15: #{model_forward.1} parent=0 // pred_check_branch
    %1098 = sbr.rel (0) target = $region17
  $region16: #{model_forward.1} parent=0 // pred_region
    _
  $region17: #{model_forward.1} parent=0 // pred_fallthru
    _
  // Predicated region
  $region18: #{model_forward.1} parent=0 // pred_check
    _
  $region19: #{model_forward.1} parent=0 // pred_check_branch
    %1100 = sbr.rel (0) target = $region21
  $region20: #{model_forward.1} parent=0 // pred_region
    _
  $region21: #{model_forward.1} parent=0 // pred_fallthru
    _

</llo_original>
